<compile_context>
chip_gen: v7x
topology: tpu7x:2x2x1
jax: 0.10.0
libtpu: 0.0.40
codegen_flags: <defaults>
</compile_context>

<pallas_src>
import functools

import jax
import jax.numpy as jnp
from jax.experimental import pallas as pl
from jax.experimental.pallas import tpu as pltpu


def _waveletattspace_kernel(xr_ref, xs_ref, w1b_ref, b1r_ref, w2b_ref, b2r_ref,
                            out_ref):
    # xr_ref : (1, tw, W*C)    raw-bitcast "view" rows i (= output w), cols (j, c')
    # xs_ref : (1, C*H, tw)    raw NCHW layout: rows (c, h), cols w
    # w1b    : (W*C, W*C//2)   block-diag fold of [Haar-LL 2x + conv1x1 2C->C//2]
    # w2b    : (W*C//2, C*H)   fold of [conv1x1 C//2->C + (h,w)->(w,h) gate scatter]
    r = xr_ref[0]                                                   # (tw, W*C)
    h = jnp.dot(r, w1b_ref[...],
                preferred_element_type=jnp.float32) + b1r_ref[...]  # (tw, W*C//2)
    h = jnp.maximum(h, 0.0)
    g = jnp.dot(h, w2b_ref[...],
                preferred_element_type=jnp.float32) + b2r_ref[...]  # (tw, C*H)
    g = jax.nn.sigmoid(g)
    att = g.T                                                       # (C*H, tw): NCHW gate
    out_ref[0] = xs_ref[0] * att


def _pick_tw(W):
    """Tile the output's minor (lane) axis only in lane multiples; else whole W."""
    if W % 256 == 0:
        return 256
    if W % 128 == 0:
        return 128
    return W


@jax.jit
def waveletattspace_forward(x, w1, b1, w2, b2):
    """x: (B, C, H, W) f32, H == W.  w1: (C//2, 2C), b1: (C//2,), w2: (C, C//2),
    b2: (C,).  Returns (B, C, H, W) f32."""
    B, C, H, W = x.shape
    assert H == W, "expand_as in the reference module requires H == W"
    assert C >= 2, "fc needs C // 2 >= 1"
    Chalf = C // 2
    f32 = jnp.float32

    x = x.astype(f32)
    w1 = w1.astype(f32)[:, :C]   # Haar high-pass of a nearest-x2 image is 0 -> only LL half
    w2 = w2.astype(f32)
    b1 = b1.astype(f32)
    b2 = b2.astype(f32)

    # ---- one-time small constant folding (O(W^2*C^2) elements, a few KiB) -----
    # GEMM-1 weight: W1b[j*C + c', j'*Chalf + o] = 2*w1[o, c'] if j == j' else 0
    m1 = jnp.arange(W * C)
    n1 = jnp.arange(W * Chalf)
    w1b = jnp.where((m1[:, None] // C) == (n1[None, :] // Chalf),
                    2.0 * w1[n1[None, :] % Chalf, m1[:, None] % C],
                    0.0).astype(f32)                                  # (W*C, W*Chalf)
    b1row = jnp.tile(b1, (W,)).reshape(1, W * Chalf)

    # GEMM-2 weight: W2b[j*Chalf + o, c*H + h] = w2[c, o] if j == h else 0
    # (column order (c outer, h inner) => g.T is already the NCHW-ordered gate)
    m2 = jnp.arange(W * Chalf)
    n2 = jnp.arange(C * H)
    w2b = jnp.where((m2[:, None] // Chalf) == (n2[None, :] % H),
                    w2[n2[None, :] // H, m2[:, None] % Chalf],
                    0.0).astype(f32)                                  # (W*Chalf, C*H)
    b2row = jnp.repeat(b2, H).reshape(1, C * H)

    # ---- free bitcast views of x (no HBM reshuffle) ---------------------------
    xr = x.reshape(B, H, W * C)     # rows = view index i (= output w), cols = (j, c')
    xs = x.reshape(B, C * H, W)     # raw NCHW: rows = (c, h), cols = w

    tw = _pick_tw(W)
    grid = (B, W // tw)

    out = pl.pallas_call(
        _waveletattspace_kernel,
        out_shape=jax.ShapeDtypeStruct((B, C * H, W), f32),
        grid_spec=pltpu.PrefetchScalarGridSpec(
            num_scalar_prefetch=0,
            grid=grid,
            in_specs=[
                pl.BlockSpec((1, tw, W * C), lambda b, wi: (b, wi, 0)),   # xr tile
                pl.BlockSpec((1, C * H, tw), lambda b, wi: (b, 0, wi)),   # xs tile
                pl.BlockSpec((W * C, W * Chalf), lambda b, wi: (0, 0)),   # w1b (resident)
                pl.BlockSpec((1, W * Chalf), lambda b, wi: (0, 0)),       # b1row
                pl.BlockSpec((W * Chalf, C * H), lambda b, wi: (0, 0)),   # w2b (resident)
                pl.BlockSpec((1, C * H), lambda b, wi: (0, 0)),           # b2row
            ],
            out_specs=pl.BlockSpec((1, C * H, tw), lambda b, wi: (b, 0, wi)),
        ),
        compiler_params=pltpu.CompilerParams(
            dimension_semantics=("parallel", "parallel")),
    )(xr, xs, w1b, b1row, w2b, b2row)
    return out.reshape(B, C, H, W)
    # TODO(synk): for very large C*W (e.g. C=64 at 224x224) the O(W^2*C^2) folded
    # weights stop being "tiny"; switch to per-position C x C//2 channel matmuls
    # with spatially tiled blocks in that regime.


def _reference(x, w1, b1, w2, b2):
    """Pure-JAX reference mirroring the PyTorch graph literally."""
    B, C, H, W = x.shape
    xp = jnp.transpose(x.reshape(B, H, W, C), (0, 3, 2, 1))          # (B,C,W,H)
    up = jnp.repeat(jnp.repeat(xp, 2, axis=2), 2, axis=3)            # nearest x2
    a = up[:, :, 0::2, 0::2]
    b_ = up[:, :, 0::2, 1::2]
    c_ = up[:, :, 1::2, 0::2]
    d_ = up[:, :, 1::2, 1::2]
    ll = 0.5 * (a + b_ + c_ + d_)
    lh = 0.5 * (-a - b_ + c_ + d_)
    hl = 0.5 * (-a + b_ - c_ + d_)
    hh = 0.5 * (a - b_ - c_ + d_)
    y0 = jnp.concatenate([ll, lh + hl + hh], axis=1)                 # (B,2C,W,H)
    h = jax.nn.relu(jnp.einsum("oc,bcwh->bowh", w1, y0)
                    + b1[None, :, None, None])
    att = jax.nn.sigmoid(jnp.einsum("oc,bcwh->bowh", w2, h)
                         + b2[None, :, None, None])
    return x * att


if __name__ == "__main__":
    B, C, H, W = 2, 4, 16, 16
    key = jax.random.PRNGKey(0)
    kx, k1, k2, k3, k4 = jax.random.split(key, 5)

    x = jax.random.normal(kx, (B, C, H, W), dtype=jnp.float32)

    # Deterministic parameter init (Conv2d-style uniform(-1/sqrt(fan_in), ..)).
    Chalf = C // 2
    lim1 = 1.0 / jnp.sqrt(2.0 * C)
    lim2 = 1.0 / jnp.sqrt(float(Chalf))
    w1 = jax.random.uniform(k1, (Chalf, 2 * C), jnp.float32, -lim1, lim1)
    b1 = jax.random.uniform(k2, (Chalf,), jnp.float32, -lim1, lim1)
    w2 = jax.random.uniform(k3, (C, Chalf), jnp.float32, -lim2, lim2)
    b2 = jax.random.uniform(k4, (C,), jnp.float32, -lim2, lim2)

    out = jax.block_until_ready(waveletattspace_forward(x, w1, b1, w2, b2))
    ref = jax.block_until_ready(_reference(x, w1, b1, w2, b2))

    assert out.shape == (B, C, H, W)
    assert jnp.max(jnp.abs(out - ref)) < 1e-5

    print("KERNEL_OK")
</pallas_src>

<mosaic_0001>
module attributes {stable_mosaic.version = 11 : i64} {
  func.func @_waveletattspace_kernel(%arg0: i32, %arg1: i32, %arg2: memref<1x16x64xf32, #tpu.memory_space<vmem>>, %arg3: memref<1x64x16xf32, #tpu.memory_space<vmem>>, %arg4: memref<64x32xf32, #tpu.memory_space<vmem>>, %arg5: memref<1x32xf32, #tpu.memory_space<vmem>>, %arg6: memref<32x64xf32, #tpu.memory_space<vmem>>, %arg7: memref<1x64xf32, #tpu.memory_space<vmem>>, %arg8: memref<1x64x16xf32, #tpu.memory_space<vmem>>) attributes {dimension_semantics = [#tpu.dimension_semantics<parallel>, #tpu.dimension_semantics<parallel>], iteration_bounds = array<i64: 2, 1>, scalar_prefetch = 0 : i64, scratch_operands = 0 : i64, tpu.core_type = #tpu.core_type<tc>, window_params = [{transform_indices = @transform_0, window_bounds = array<i64: 1, 16, 64>}, {transform_indices = @transform_1, window_bounds = array<i64: 1, 64, 16>}, {pipeline_mode = #tpu.pipeline_mode<synchronous>, transform_indices = @transform_2, window_bounds = array<i64: 64, 32>}, {pipeline_mode = #tpu.pipeline_mode<synchronous>, transform_indices = @transform_3, window_bounds = array<i64: 1, 32>}, {pipeline_mode = #tpu.pipeline_mode<synchronous>, transform_indices = @transform_4, window_bounds = array<i64: 32, 64>}, {pipeline_mode = #tpu.pipeline_mode<synchronous>, transform_indices = @transform_5, window_bounds = array<i64: 1, 64>}, {transform_indices = @transform_6, window_bounds = array<i64: 1, 64, 16>}]} {
    %c0 = arith.constant 0 : index
    %c0_0 = arith.constant 0 : index
    %c0_1 = arith.constant 0 : index
    %0 = vector.load %arg2[%c0, %c0_0, %c0_1] : memref<1x16x64xf32, #tpu.memory_space<vmem>>, vector<1x16x64xf32>
    %1 = vector.shape_cast %0 : vector<1x16x64xf32> to vector<16x64xf32>
    %c0_2 = arith.constant 0 : index
    %c0_3 = arith.constant 0 : index
    %2 = vector.load %arg4[%c0_2, %c0_3] : memref<64x32xf32, #tpu.memory_space<vmem>>, vector<64x32xf32>
    %cst = arith.constant dense<0.000000e+00> : vector<16x32xf32>
    %3 = tpu.matmul %1, %2, %cst {dimension_numbers = #tpu.dot_dimension_numbers<[1], [0], [0], [1], [0, 0, 1, 1], [], []>} : vector<16x64xf32>, vector<64x32xf32>, vector<16x32xf32> -> vector<16x32xf32>
    %c0_4 = arith.constant 0 : index
    %c0_5 = arith.constant 0 : index
    %4 = vector.load %arg5[%c0_4, %c0_5] : memref<1x32xf32, #tpu.memory_space<vmem>>, vector<1x32xf32>
    %5 = vector.broadcast %4 : vector<1x32xf32> to vector<16x32xf32>
    %6 = arith.addf %3, %5 : vector<16x32xf32>
    %cst_6 = arith.constant 0.000000e+00 : f32
    %7 = vector.broadcast %cst_6 : f32 to vector<16x32xf32>
    %8 = arith.maximumf %6, %7 : vector<16x32xf32>
    %c0_7 = arith.constant 0 : index
    %c0_8 = arith.constant 0 : index
    %9 = vector.load %arg6[%c0_7, %c0_8] : memref<32x64xf32, #tpu.memory_space<vmem>>, vector<32x64xf32>
    %cst_9 = arith.constant dense<0.000000e+00> : vector<16x64xf32>
    %10 = tpu.matmul %8, %9, %cst_9 {dimension_numbers = #tpu.dot_dimension_numbers<[1], [0], [0], [1], [0, 0, 1, 1], [], []>} : vector<16x32xf32>, vector<32x64xf32>, vector<16x64xf32> -> vector<16x64xf32>
    %c0_10 = arith.constant 0 : index
    %c0_11 = arith.constant 0 : index
    %11 = vector.load %arg7[%c0_10, %c0_11] : memref<1x64xf32, #tpu.memory_space<vmem>>, vector<1x64xf32>
    %12 = vector.broadcast %11 : vector<1x64xf32> to vector<16x64xf32>
    %13 = arith.addf %10, %12 : vector<16x64xf32>
    %14 = arith.negf %13 : vector<16x64xf32>
    %15 = math.exp %14 : vector<16x64xf32>
    %cst_12 = arith.constant 1.000000e+00 : f32
    %16 = vector.broadcast %cst_12 : f32 to vector<16x64xf32>
    %17 = arith.addf %16, %15 : vector<16x64xf32>
    %18 = arith.divf %16, %17 : vector<16x64xf32>
    %19 = tpu.transpose %18, [1, 0] : vector<16x64xf32> -> vector<64x16xf32>
    %c0_13 = arith.constant 0 : index
    %c0_14 = arith.constant 0 : index
    %c0_15 = arith.constant 0 : index
    %20 = vector.load %arg3[%c0_13, %c0_14, %c0_15] : memref<1x64x16xf32, #tpu.memory_space<vmem>>, vector<1x64x16xf32>
    %21 = vector.shape_cast %20 : vector<1x64x16xf32> to vector<64x16xf32>
    %22 = arith.mulf %21, %19 : vector<64x16xf32>
    %c0_16 = arith.constant 0 : index
    %c0_17 = arith.constant 0 : index
    %c0_18 = arith.constant 0 : index
    %23 = vector.load %arg8[%c0_16, %c0_17, %c0_18] : memref<1x64x16xf32, #tpu.memory_space<vmem>>, vector<1x64x16xf32>
    %24 = vector.shape_cast %23 : vector<1x64x16xf32> to vector<64x16xf32>
    %25 = vector.shape_cast %22 : vector<64x16xf32> to vector<1x64x16xf32>
    tpu.vector_store %arg8[%c0_16, %c0_17, %c0_18], %25 {strides = array<i32>} : memref<1x64x16xf32, #tpu.memory_space<vmem>>, vector<1x64x16xf32>,
    return
  }
  func.func @transform_0(%arg0: i32, %arg1: i32) -> (i32, i32, i32) {
    %c0_i32 = arith.constant 0 : i32
    %c0_i32_0 = arith.constant 0 : i32
    return %arg0, %arg1, %c0_i32 : i32, i32, i32
  }
  func.func @transform_1(%arg0: i32, %arg1: i32) -> (i32, i32, i32) {
    %c0_i32 = arith.constant 0 : i32
    %c0_i32_0 = arith.constant 0 : i32
    return %arg0, %c0_i32, %arg1 : i32, i32, i32
  }
  func.func @transform_2(%arg0: i32, %arg1: i32) -> (i32, i32) {
    %c0_i32 = arith.constant 0 : i32
    %c0_i32_0 = arith.constant 0 : i32
    %c0_i32_1 = arith.constant 0 : i32
    return %c0_i32, %c0_i32_0 : i32, i32
  }
  func.func @transform_3(%arg0: i32, %arg1: i32) -> (i32, i32) {
    %c0_i32 = arith.constant 0 : i32
    %c0_i32_0 = arith.constant 0 : i32
    %c0_i32_1 = arith.constant 0 : i32
    return %c0_i32, %c0_i32_0 : i32, i32
  }
  func.func @transform_4(%arg0: i32, %arg1: i32) -> (i32, i32) {
    %c0_i32 = arith.constant 0 : i32
    %c0_i32_0 = arith.constant 0 : i32
    %c0_i32_1 = arith.constant 0 : i32
    return %c0_i32, %c0_i32_0 : i32, i32
  }
  func.func @transform_5(%arg0: i32, %arg1: i32) -> (i32, i32) {
    %c0_i32 = arith.constant 0 : i32
    %c0_i32_0 = arith.constant 0 : i32
    %c0_i32_1 = arith.constant 0 : i32
    return %c0_i32, %c0_i32_0 : i32, i32
  }
  func.func @transform_6(%arg0: i32, %arg1: i32) -> (i32, i32, i32) {
    %c0_i32 = arith.constant 0 : i32
    %c0_i32_0 = arith.constant 0 : i32
    return %arg0, %c0_i32, %arg1 : i32, i32, i32
  }
}

</mosaic_0001>

<llo_original>
// kernel: tile.8
$region0: #{tile.8}
  #allocation0 [shape = 's32[1]{0}', space=sflag, size = 0x4, scoped, tag = 'scoped memory for tile.8']
  %s0 = inlined_call_operand.vmem [shape: f32[2], index: 0, kind: input, shape index: {}]
  %s1 = inlined_call_operand.vmem [shape: f32[16,2], index: 1, kind: output, shape index: {}]
  // Predicated region
  $region2: #{tile.8} parent=0 // pred_check
    _
  $region3: #{tile.8} parent=0 // pred_check_branch
    %3 = sbr.rel (0) target = $region5
  $region4: #{tile.8} parent=0 // pred_region
    _
  $region5: #{tile.8} parent=0 // pred_fallthru
    _
  %v4 = vld [vmem:[%s0] ss:$0 sm:$0xff]
  %5 = vst [vmem:[%s1] sm:$0xff] %v4
  %s6 = scalar_lea.vmem %s1, 8
  %7 = vst [vmem:[%s6] sm:$0xff] %v4

// kernel: tile.9
$region0: #{tile.9}
  %s0 = inlined_call_operand.vmem [shape: f32[16,2], index: 0, kind: input, shape index: {}]
  %s1 = inlined_call_operand.vmem [shape: f32[1,32], index: 1, kind: output, shape index: {}]
  $region1: #{tile.9} parent=0
    #allocation0 [shape = 'u8[4096]{0}', space=vmem, size = 0x1000, scoped, tag = 'scoped mem for output reshape']
    %v2 = vld [vmem:[%s0] sm:$0x1]
    %vm3 = vcmask 15360
    %4 = vst.msk [vmem:[#allocation0] sm:$0x1] %vm3, %v2
    %s5 = scalar_lea.vmem %s0, 15
    %v6 = vld [vmem:[%s5] sm:$0x1]
    %7 = vrot.lane.b32.xlu0 %v6, 30
    %v8 = vpop.permute.xlu0 %7
    %vm9 = vcmask 261360
    %10 = vst.msk [vmem:[#allocation0] sm:$0x1] %vm9, %v8
    %s11 = scalar_lea.vmem %s0, 14
    %v12 = vld [vmem:[%s11] sm:$0x1]
    %13 = vrot.lane.b32.xlu0 %v12, 28
    %v14 = vpop.permute.xlu0 %13
    %vm15 = vcmask 244960
    %16 = vst.msk [vmem:[#allocation0] sm:$0x1] %vm15, %v14
    %s17 = scalar_lea.vmem %s0, 13
    %v18 = vld [vmem:[%s17] sm:$0x1]
    %19 = vrot.lane.b32.xlu0 %v18, 26
    %v20 = vpop.permute.xlu0 %19
    %vm21 = vcmask 228560
    %22 = vst.msk [vmem:[#allocation0] sm:$0x1] %vm21, %v20
    %s23 = scalar_lea.vmem %s0, 12
    %v24 = vld [vmem:[%s23] sm:$0x1]
    %25 = vrot.lane.b32.xlu0 %v24, 24
    %v26 = vpop.permute.xlu0 %25
    %vm27 = vcmask 212160
    %28 = vst.msk [vmem:[#allocation0] sm:$0x1] %vm27, %v26
    %s29 = scalar_lea.vmem %s0, 11
    %v30 = vld [vmem:[%s29] sm:$0x1]
    %31 = vrot.lane.b32.xlu0 %v30, 22
    %v32 = vpop.permute.xlu0 %31
    %vm33 = vcmask 195760
    %34 = vst.msk [vmem:[#allocation0] sm:$0x1] %vm33, %v32
    %s35 = scalar_lea.vmem %s0, 10
    %v36 = vld [vmem:[%s35] sm:$0x1]
    %37 = vrot.lane.b32.xlu0 %v36, 20
    %v38 = vpop.permute.xlu0 %37
    %vm39 = vcmask 179360
    %40 = vst.msk [vmem:[#allocation0] sm:$0x1] %vm39, %v38
    %s41 = scalar_lea.vmem %s0, 9
    %v42 = vld [vmem:[%s41] sm:$0x1]
    %43 = vrot.lane.b32.xlu0 %v42, 18
    %v44 = vpop.permute.xlu0 %43
    %vm45 = vcmask 162960
    %46 = vst.msk [vmem:[#allocation0] sm:$0x1] %vm45, %v44
    %s47 = scalar_lea.vmem %s0, 8
    %v48 = vld [vmem:[%s47] sm:$0x1]
    %49 = vrot.lane.b32.xlu0 %v48, 16
    %v50 = vpop.permute.xlu0 %49
    %vm51 = vcmask 146560
    %52 = vst.msk [vmem:[#allocation0] sm:$0x1] %vm51, %v50
    %s53 = scalar_lea.vmem %s0, 7
    %v54 = vld [vmem:[%s53] sm:$0x1]
    %55 = vrot.lane.b32.xlu0 %v54, 14
    %v56 = vpop.permute.xlu0 %55
    %vm57 = vcmask 130160
    %58 = vst.msk [vmem:[#allocation0] sm:$0x1] %vm57, %v56
    %s59 = scalar_lea.vmem %s0, 6
    %v60 = vld [vmem:[%s59] sm:$0x1]
    %61 = vrot.lane.b32.xlu0 %v60, 12
    %v62 = vpop.permute.xlu0 %61
    %vm63 = vcmask 113760
    %64 = vst.msk [vmem:[#allocation0] sm:$0x1] %vm63, %v62
    %s65 = scalar_lea.vmem %s0, 5
    %v66 = vld [vmem:[%s65] sm:$0x1]
    %67 = vrot.lane.b32.xlu0 %v66, 10
    %v68 = vpop.permute.xlu0 %67
    %vm69 = vcmask 97360
    %70 = vst.msk [vmem:[#allocation0] sm:$0x1] %vm69, %v68
    %s71 = scalar_lea.vmem %s0, 4
    %v72 = vld [vmem:[%s71] sm:$0x1]
    %73 = vrot.lane.b32.xlu0 %v72, 8
    %v74 = vpop.permute.xlu0 %73
    %vm75 = vcmask 80960
    %76 = vst.msk [vmem:[#allocation0] sm:$0x1] %vm75, %v74
    %s77 = scalar_lea.vmem %s0, 3
    %v78 = vld [vmem:[%s77] sm:$0x1]
    %79 = vrot.lane.b32.xlu0 %v78, 6
    %v80 = vpop.permute.xlu0 %79
    %vm81 = vcmask 64560
    %82 = vst.msk [vmem:[#allocation0] sm:$0x1] %vm81, %v80
    %s83 = scalar_lea.vmem %s0, 2
    %v84 = vld [vmem:[%s83] sm:$0x1]
    %85 = vrot.lane.b32.xlu0 %v84, 4
    %v86 = vpop.permute.xlu0 %85
    %vm87 = vcmask 48160
    %88 = vst.msk [vmem:[#allocation0] sm:$0x1] %vm87, %v86
    %s89 = scalar_lea.vmem %s0, 1
    %v90 = vld [vmem:[%s89] sm:$0x1]
    %91 = vrot.lane.b32.xlu0 %v90, 2
    %v92 = vpop.permute.xlu0 %91
    %vm93 = vcmask 31760
    %94 = vst.msk [vmem:[#allocation0] sm:$0x1] %vm93, %v92
    %s96 = sshllo.u32 0, 1
    %v98 = vld [vmem:[#allocation0] sm:%s96]
    %s99 = sshllo.u32 0, 1
    %100 = vst [vmem:[%s1] sm:%s99] %v98

// kernel: waveletattspace_forward.1
$region0: #{waveletattspace_forward.1}
  #allocation0 [shape = 'u32[]', space=smem, size = 0x4, offset = 0x4, fixed_abs, tag = 'smem constant byte address 0x4 - core index']
  #allocation1 [shape = 'u32[144,128]{1,0:T(1,128)}', space=vmem, size = 0x12000, scoped, tag = 'internal scratch']
  %s0 = inlined_call_operand.vmem [shape: f32[2,16,64], index: 0, kind: input, shape index: {}]
  %s1 = inlined_call_operand.vmem [shape: f32[2,64,16], index: 1, kind: input, shape index: {}]
  %s2 = inlined_call_operand.vmem [shape: f32[64,32], index: 2, kind: input, shape index: {}]
  %s3 = inlined_call_operand.vmem [shape: f32[1,32], index: 3, kind: input, shape index: {}]
  %s4 = inlined_call_operand.vmem [shape: f32[32,64], index: 4, kind: input, shape index: {}]
  %s5 = inlined_call_operand.vmem [shape: f32[1,64], index: 5, kind: input, shape index: {}]
  %s6 = inlined_call_operand.hbm [shape: f32[2,64,16], index: 6, kind: output, shape index: {}]
  %s7 = sld [smem:[#allocation0]]
  $region57: #{waveletattspace_forward.1} parent=0
    _
  %s9 = ssub.s32 1, %s7
  %s10 = scalar_select 0, %s9, %s7
  $region1: #{waveletattspace_forward.1} parent=0
    #allocation2 [shape = 'u8[65536]{0}', space=vmem, size = 0x10000, scoped, tag = 'output window, operand 0']
    #allocation3 [shape = 's32[2]{0}', space=sflag, size = 0x8, scoped, tag = 'scoped memory for waveletattspace_forward.1']
    %11 = vsyncpa [#allocation3], 0
    %s12 = scalar_lea.sflag [#allocation3], 1
    %13 = vsyncpa %s12, 0
    loop: start=0, step=1, limit=4
    $region2: #{waveletattspace_forward.1} parent=1 // loop_pre_header
      _
    $region3: #{waveletattspace_forward.1} parent=1 // loop_header
      %s15 = sphi 0, %s19
      %p16 = scmp.ge.s32.totalorder %s15, 4
      %s22 = sphi 0, %s34
      %s23 = sphi 0, %s30
      %s24 = sphi 0, %s22
      %s25 = sphi 0, %s23
      %s26 = sphi 0, %s24
      %s27 = sphi 0, %s25
      %s39 = sphi 0, %s41
      %s42 = sphi 0, %s39
      %s43 = sphi 0, %s42
      %s59 = sphi 0, %s43
      %s67 = sphi 0, %s69
      %s70 = sphi 0, %s67
      %s71 = sphi 0, %s70
      %s87 = sphi 0, %s71
      %s91 = sphi 0, %s91
      %s93 = sphi 0, %s91
      %s94 = sphi 0, %s93
      %s108 = sphi 0, %s94
      %s112 = sphi 0, %s112
      %s114 = sphi 0, %s112
      %s115 = sphi 0, %s114
      %s129 = sphi 0, %s115
      %s133 = sphi 0, %s133
      %s135 = sphi 0, %s133
      %s136 = sphi 0, %s135
      %s150 = sphi 0, %s136
      %s154 = sphi 0, %s154
      %s156 = sphi 0, %s154
      %s157 = sphi 0, %s156
      %s171 = sphi 0, %s157
      %s179 = sphi 0, %s181
      %s182 = sphi 0, %s179
      %s183 = sphi 0, %s182
      %s199 = sphi 0, %s183
    $region4: #{waveletattspace_forward.1} parent=1 // loop_header_branch
      %18 = sbr.rel (%p16) target = $region8
    $region5: #{waveletattspace_forward.1} parent=1 // loop_body
      %s20 = ssub.s32 %s15, 1
      %s21 = ssub.s32 %s15, 2
      %s28 = sadd.s32 1, %s23
      %p29 = scmp.ge.s32.totalorder %s28, 1
      %s30 = scalar_select %p29, 0, %s28
      %s31 = sadd.s32 1, %s22
      %s32 = scalar_select %p29, %s31, %s22
      %p33 = scmp.ge.s32.totalorder %s32, 2
      %s34 = scalar_select %p33, 0, %s32
      %s35 = ssub.s32 %s22, %s34
      %s36 = ssub.s32 %s23, %s30
      %s37 = sor.u32 %s35, %s36
      %p38 = scmp.eq.s32.totalorder %s37, 0
      %s40 = sadd.s32 %s39, 1
      %s41 = scalar_select %p38, %s39, %s40
      %p44 = pneg %p38
      %p45 = scmp.eq.s32.totalorder %s15, 1
      %p46 = por %p44, %p45
      %p47 = scmp.ne.s32.totalorder %s39, %s42
      %p48 = scmp.eq.s32.totalorder %s15, 0
      %p49 = por %p47, %p48
      %p50 = scmp.ne.s32.totalorder %s39, %s42
      %p51 = scmp.eq.s32.totalorder %s20, 1
      %p52 = por %p50, %p51
      %p53 = scmp.ne.s32.totalorder %s42, %s43
      %p54 = scmp.eq.s32.totalorder %s20, 0
      %p55 = por %p53, %p54
      %p56 = scmp.ne.s32.totalorder %s42, %s43
      %p57 = scmp.eq.s32.totalorder %s21, 1
      %p58 = por %p56, %p57
      %p60 = scmp.ne.s32.totalorder %s43, %s59
      %p61 = scmp.eq.s32.totalorder %s21, 0
      %p62 = por %p60, %p61
      %s63 = ssub.s32 %s22, %s34
      %s64 = ssub.s32 %s23, %s30
      %s65 = sor.u32 %s63, %s64
      %p66 = scmp.eq.s32.totalorder %s65, 0
      %s68 = sadd.s32 %s67, 1
      %s69 = scalar_select %p66, %s67, %s68
      %p72 = pneg %p66
      %p73 = scmp.eq.s32.totalorder %s15, 1
      %p74 = por %p72, %p73
      %p75 = scmp.ne.s32.totalorder %s67, %s70
      %p76 = scmp.eq.s32.totalorder %s15, 0
      %p77 = por %p75, %p76
      %p78 = scmp.ne.s32.totalorder %s67, %s70
      %p79 = scmp.eq.s32.totalorder %s20, 1
      %p80 = por %p78, %p79
      %p81 = scmp.ne.s32.totalorder %s70, %s71
      %p82 = scmp.eq.s32.totalorder %s20, 0
      %p83 = por %p81, %p82
      %p84 = scmp.ne.s32.totalorder %s70, %s71
      %p85 = scmp.eq.s32.totalorder %s21, 1
      %p86 = por %p84, %p85
      %p88 = scmp.ne.s32.totalorder %s71, %s87
      %p89 = scmp.eq.s32.totalorder %s21, 0
      %p90 = por %p88, %p89
      %s92 = sadd.s32 %s91, 1
      %p95 = scmp.eq.s32.totalorder %s15, 1
      %p96 = scmp.ne.s32.totalorder %s91, %s93
      %p97 = scmp.eq.s32.totalorder %s15, 0
      %p98 = por %p96, %p97
      %p99 = scmp.ne.s32.totalorder %s91, %s93
      %p100 = scmp.eq.s32.totalorder %s20, 1
      %p101 = por %p99, %p100
      %p102 = scmp.ne.s32.totalorder %s93, %s94
      %p103 = scmp.eq.s32.totalorder %s20, 0
      %p104 = por %p102, %p103
      %p105 = scmp.ne.s32.totalorder %s93, %s94
      %p106 = scmp.eq.s32.totalorder %s21, 1
      %p107 = por %p105, %p106
      %p109 = scmp.ne.s32.totalorder %s94, %s108
      %p110 = scmp.eq.s32.totalorder %s21, 0
      %p111 = por %p109, %p110
      %s113 = sadd.s32 %s112, 1
      %p116 = scmp.eq.s32.totalorder %s15, 1
      %p117 = scmp.ne.s32.totalorder %s112, %s114
      %p118 = scmp.eq.s32.totalorder %s15, 0
      %p119 = por %p117, %p118
      %p120 = scmp.ne.s32.totalorder %s112, %s114
      %p121 = scmp.eq.s32.totalorder %s20, 1
      %p122 = por %p120, %p121
      %p123 = scmp.ne.s32.totalorder %s114, %s115
      %p124 = scmp.eq.s32.totalorder %s20, 0
      %p125 = por %p123, %p124
      %p126 = scmp.ne.s32.totalorder %s114, %s115
      %p127 = scmp.eq.s32.totalorder %s21, 1
      %p128 = por %p126, %p127
      %p130 = scmp.ne.s32.totalorder %s115, %s129
      %p131 = scmp.eq.s32.totalorder %s21, 0
      %p132 = por %p130, %p131
      %s134 = sadd.s32 %s133, 1
      %p137 = scmp.eq.s32.totalorder %s15, 1
      %p138 = scmp.ne.s32.totalorder %s133, %s135
      %p139 = scmp.eq.s32.totalorder %s15, 0
      %p140 = por %p138, %p139
      %p141 = scmp.ne.s32.totalorder %s133, %s135
      %p142 = scmp.eq.s32.totalorder %s20, 1
      %p143 = por %p141, %p142
      %p144 = scmp.ne.s32.totalorder %s135, %s136
      %p145 = scmp.eq.s32.totalorder %s20, 0
      %p146 = por %p144, %p145
      %p147 = scmp.ne.s32.totalorder %s135, %s136
      %p148 = scmp.eq.s32.totalorder %s21, 1
      %p149 = por %p147, %p148
      %p151 = scmp.ne.s32.totalorder %s136, %s150
      %p152 = scmp.eq.s32.totalorder %s21, 0
      %p153 = por %p151, %p152
      %s155 = sadd.s32 %s154, 1
      %p158 = scmp.eq.s32.totalorder %s15, 1
      %p159 = scmp.ne.s32.totalorder %s154, %s156
      %p160 = scmp.eq.s32.totalorder %s15, 0
      %p161 = por %p159, %p160
      %p162 = scmp.ne.s32.totalorder %s154, %s156
      %p163 = scmp.eq.s32.totalorder %s20, 1
      %p164 = por %p162, %p163
      %p165 = scmp.ne.s32.totalorder %s156, %s157
      %p166 = scmp.eq.s32.totalorder %s20, 0
      %p167 = por %p165, %p166
      %p168 = scmp.ne.s32.totalorder %s156, %s157
      %p169 = scmp.eq.s32.totalorder %s21, 1
      %p170 = por %p168, %p169
      %p172 = scmp.ne.s32.totalorder %s157, %s171
      %p173 = scmp.eq.s32.totalorder %s21, 0
      %p174 = por %p172, %p173
      %s175 = ssub.s32 %s22, %s34
      %s176 = ssub.s32 %s23, %s30
      %s177 = sor.u32 %s175, %s176
      %p178 = scmp.eq.s32.totalorder %s177, 0
      %s180 = sadd.s32 %s179, 1
      %s181 = scalar_select %p178, %s179, %s180
      %p184 = pneg %p178
      %p185 = scmp.eq.s32.totalorder %s15, 1
      %p186 = por %p184, %p185
      %p187 = scmp.ne.s32.totalorder %s179, %s182
      %p188 = scmp.eq.s32.totalorder %s15, 0
      %p189 = por %p187, %p188
      %p190 = scmp.ne.s32.totalorder %s179, %s182
      %p191 = scmp.eq.s32.totalorder %s20, 1
      %p192 = por %p190, %p191
      %p193 = scmp.ne.s32.totalorder %s182, %s183
      %p194 = scmp.eq.s32.totalorder %s20, 0
      %p195 = por %p193, %p194
      %p196 = scmp.ne.s32.totalorder %s182, %s183
      %p197 = scmp.eq.s32.totalorder %s21, 1
      %p198 = por %p196, %p197
      %p200 = scmp.ne.s32.totalorder %s183, %s199
      %p201 = scmp.eq.s32.totalorder %s21, 0
      %p202 = por %p200, %p201
      %p203 = scmp.le.s32.totalorder 1, %s15
      %p204 = scmp.lt.s32.totalorder %s15, 3
      %p205 = pnand %p203, %p204
      %p206 = pneg %p205
      // Predicated region
      $region9: #{waveletattspace_forward.1} parent=5 // pred_check
        _
      $region10: #{waveletattspace_forward.1} parent=5 // pred_check_branch
        %208 = sbr.rel (%p205) target = $region12
      $region11: #{waveletattspace_forward.1} parent=5 // pred_region
        %s209 = ssub.s32 %s15, 1
        // Predicated region
        $region13: #{waveletattspace_forward.1} parent=11 // pred_check
          %p210 = pneg %p104
        $region14: #{waveletattspace_forward.1} parent=11 // pred_check_branch
          %212 = sbr.rel (%p210) target = $region16
        $region15: #{waveletattspace_forward.1} parent=11 // pred_region
          _
        $region16: #{waveletattspace_forward.1} parent=11 // pred_fallthru
          _
        // Predicated region
        $region17: #{waveletattspace_forward.1} parent=11 // pred_check
          %p213 = pneg %p125
        $region18: #{waveletattspace_forward.1} parent=11 // pred_check_branch
          %215 = sbr.rel (%p213) target = $region20
        $region19: #{waveletattspace_forward.1} parent=11 // pred_region
          _
        $region20: #{waveletattspace_forward.1} parent=11 // pred_fallthru
          _
        // Predicated region
        $region21: #{waveletattspace_forward.1} parent=11 // pred_check
          %p216 = pneg %p146
        $region22: #{waveletattspace_forward.1} parent=11 // pred_check_branch
          %218 = sbr.rel (%p216) target = $region24
        $region23: #{waveletattspace_forward.1} parent=11 // pred_region
          _
        $region24: #{waveletattspace_forward.1} parent=11 // pred_fallthru
          _
        // Predicated region
        $region25: #{waveletattspace_forward.1} parent=11 // pred_check
          %p219 = pneg %p167
        $region26: #{waveletattspace_forward.1} parent=11 // pred_check_branch
          %221 = sbr.rel (%p219) target = $region28
        $region27: #{waveletattspace_forward.1} parent=11 // pred_region
          _
        $region28: #{waveletattspace_forward.1} parent=11 // pred_fallthru
          _
      $region12: #{waveletattspace_forward.1} parent=5 // pred_fallthru
        _
      %p222 = scmp.lt.s32.totalorder %s15, 2
      // Predicated region
      $region29: #{waveletattspace_forward.1} parent=5 // pred_check
        %p223 = pneg %p222
      $region30: #{waveletattspace_forward.1} parent=5 // pred_check_branch
        %225 = sbr.rel (%p223) target = $region32
      $region31: #{waveletattspace_forward.1} parent=5 // pred_region
        // Predicated region
        $region33: #{waveletattspace_forward.1} parent=31 // pred_check
          %p226 = pneg %p49
        $region34: #{waveletattspace_forward.1} parent=31 // pred_check_branch
          %228 = sbr.rel (%p226) target = $region36
        $region35: #{waveletattspace_forward.1} parent=31 // pred_region
          %s229 = smul.u32 2, %s23
          %p230 = scmp.lt.s32.totalorder %s22, 1
          %s231 = scalar_select %p230, %s22, 1
          %p232 = scmp.lt.s32.totalorder %s229, 1
          %s233 = scalar_select %p232, %s229, 1
          %s234 = smul.addr %s231, 2
          %s235 = sadd.s32 %s233, %s234
          %s236 = smul.addr %s235, 8
          %s237 = scalar_lea.vmem %s0, %s236
          %s238 = smul.u32 2, %s23
        $region36: #{waveletattspace_forward.1} parent=31 // pred_fallthru
          _
        // Predicated region
        $region37: #{waveletattspace_forward.1} parent=31 // pred_check
          %p239 = pneg %p77
        $region38: #{waveletattspace_forward.1} parent=31 // pred_check_branch
          %241 = sbr.rel (%p239) target = $region40
        $region39: #{waveletattspace_forward.1} parent=31 // pred_region
          %p242 = scmp.lt.s32.totalorder %s22, 1
          %s243 = scalar_select %p242, %s22, 1
          %p244 = scmp.lt.s32.totalorder %s23, 0
          %s245 = scalar_select %p244, %s23, 0
          %s246 = smul.addr %s243, 8
          %s247 = sadd.s32 %s245, %s246
          %s248 = smul.addr %s247, 8
          %s249 = scalar_lea.vmem %s1, %s248
        $region40: #{waveletattspace_forward.1} parent=31 // pred_fallthru
          _
      $region32: #{waveletattspace_forward.1} parent=5 // pred_fallthru
        _
      %p250 = scmp.le.s32.totalorder 1, %s15
      %p251 = scmp.lt.s32.totalorder %s15, 3
      %p252 = pnand %p250, %p251
      %p253 = pneg %p252
      // Predicated region
      $region41: #{waveletattspace_forward.1} parent=5 // pred_check
        _
      $region42: #{waveletattspace_forward.1} parent=5 // pred_check_branch
        %255 = sbr.rel (%p252) target = $region44
      $region43: #{waveletattspace_forward.1} parent=5 // pred_region
        %s256 = ssub.s32 %s15, 1
        %s257 = smul.u32 2, %s25
        %p258 = scmp.lt.s32.totalorder %s24, 1
        %s259 = scalar_select %p258, %s24, 1
        %p260 = scmp.lt.s32.totalorder %s257, 1
        %s261 = scalar_select %p260, %s257, 1
        %s262 = smul.addr %s259, 2
        %s263 = sadd.s32 %s261, %s262
        %s264 = smul.addr %s263, 8
        %s265 = scalar_lea.vmem %s0, %s264
        %p266 = pneg %p55
        %p267 = pneg %p52
        %p268 = scmp.lt.s32.totalorder %s24, 1
        %s269 = scalar_select %p268, %s24, 1
        %p270 = scmp.lt.s32.totalorder %s25, 0
        %s271 = scalar_select %p270, %s25, 0
        %s272 = smul.addr %s269, 8
        %s273 = sadd.s32 %s271, %s272
        %s274 = smul.addr %s273, 8
        %s275 = scalar_lea.vmem %s1, %s274
        %p276 = pneg %p83
        %p277 = pneg %p80
        %p278 = pneg %p104
        %p279 = pneg %p101
        %p280 = pneg %p125
        %p281 = pneg %p122
        %p282 = pneg %p146
        %p283 = pneg %p143
        %p284 = pneg %p167
        %p285 = pneg %p164
        %p286 = pneg %p195
        %p287 = pneg %p192
        %s288 = sand.u32 %s182, 1
        %s289 = scalar_lea.sflag [#allocation3], %s288
        %s290 = sand.u32 %s182, 1
        %s291 = smul.addr %s290, 64
        %s292 = scalar_lea.vmem [#allocation2], %s291
        %s293 = smul.u32 2, %s25
        %p294 = scmp.lt.s32.totalorder %s24, 1
        %s295 = scalar_select %p294, %s24, 1
        %p296 = scmp.lt.s32.totalorder %s293, 1
        %s297 = scalar_select %p296, %s293, 1
        %s298 = smul.addr %s295, 2
        %s299 = sadd.s32 %s297, %s298
        %s300 = smul.addr %s299, 8
        %s301 = scalar_lea.vmem %s0, %s300
        %s302 = smul.u32 2, %s25
        %p303 = scmp.lt.s32.totalorder %s24, 1
        %s304 = scalar_select %p303, %s24, 1
        %p305 = scmp.lt.s32.totalorder %s25, 0
        %s306 = scalar_select %p305, %s25, 0
        %s307 = smul.addr %s304, 8
        %s308 = sadd.s32 %s306, %s307
        %s309 = smul.addr %s308, 8
        %s310 = scalar_lea.vmem %s1, %s309
        %v311 = vld [vmem:[%s301] sm:$0xff]
        %v312 = vld [vmem:[%s301 + $0x8] sm:$0xff]
        %v313 = vld [vmem:[%s2] sm:$0xff]
        %v314 = vld [vmem:[%s2 + $0x8] sm:$0xff]
        %v315 = vld [vmem:[%s2 + $0x10] sm:$0xff]
        %v316 = vld [vmem:[%s2 + $0x18] sm:$0xff]
        %v317 = vld [vmem:[%s2 + $0x20] sm:$0xff]
        %v318 = vld [vmem:[%s2 + $0x28] sm:$0xff]
        %v319 = vld [vmem:[%s2 + $0x30] sm:$0xff]
        %v320 = vld [vmem:[%s2 + $0x38] sm:$0xff]
        %v321 = vld [vmem:[%s3] sm:$0x1]
        %v323 = vlaneseq
        %v324 = vshrl.u32 %v323, 7
        %v325 = vsub.s32 0, %v324
        %v326 = vrot.slane %v321, %v325
        %vm328 = vcmask 523264
        %v330 = vsel %vm328, %v311, 0
        %v333 = vsel %vm328, %v312, 0
        %335 = vmatprep.subr.mxu0 0.0
        %336 = vmatpush1.msra.mxu0 %v313
        %337 = vmatprep.subr.mxu0 0.0
        %338 = vmatpush1.msra.mxu0 %v314
        %339 = vmatprep.subr.mxu0 0.0
        %340 = vmatpush1.msra.mxu0 %v315
        %341 = vmatprep.subr.mxu0 0.0
        %342 = vmatpush1.msra.mxu0 %v316
        %343 = vmatprep.subr.mxu0 0.0
        %344 = vmatpush1.msra.mxu0 %v317
        %345 = vmatprep.subr.mxu0 0.0
        %346 = vmatpush1.msra.mxu0 %v318
        %347 = vmatprep.subr.mxu0 0.0
        %348 = vmatpush1.msra.mxu0 %v319
        %349 = vmatprep.subr.mxu0 0.0
        %350 = vmatpush1.msra.mxu0 %v320
        %351 = vmatprep.subr.mxu0 0.0
        %352 = vmatpush1.msra.mxu0 0.0
        %353 = vmatprep.subr.mxu0 0.0
        %354 = vmatpush1.msra.mxu0 0.0
        %355 = vmatprep.subr.mxu0 0.0
        %356 = vmatpush1.msra.mxu0 0.0
        %357 = vmatprep.subr.mxu0 0.0
        %358 = vmatpush1.msra.mxu0 0.0
        %359 = vmatprep.subr.mxu0 0.0
        %360 = vmatpush1.msra.mxu0 0.0
        %361 = vmatprep.subr.mxu0 0.0
        %362 = vmatpush1.msra.mxu0 0.0
        %363 = vmatprep.subr.mxu0 0.0
        %364 = vmatpush1.msra.mxu0 0.0
        %365 = vmatprep.subr.mxu0 0.0
        %366 = vmatpush1.msra.mxu0 0.0
        %367 = vmatprep.subr.mxu0 0.0
        %368 = vmatpush1.msra.mxu0 0.0
        %369 = vmatprep.subr.mxu0 0.0
        %370 = vmatpush1.msra.mxu0 0.0
        %371 = vmatprep.subr.mxu0 0.0
        %372 = vmatpush1.msra.mxu0 0.0
        %373 = vmatprep.subr.mxu0 0.0
        %374 = vmatpush1.msra.mxu0 0.0
        %375 = vmatprep.subr.mxu0 0.0
        %376 = vmatpush1.msra.mxu0 0.0
        %377 = vmatprep.subr.mxu0 0.0
        %378 = vmatpush1.msra.mxu0 0.0
        %379 = vmatprep.subr.mxu0 0.0
        %380 = vmatpush1.msra.mxu0 0.0
        %381 = vmatprep.subr.mxu0 0.0
        %382 = vmatpush1.msra.mxu0 0.0
        %383 = vmatprep.subr.mxu0 0.0
        %384 = vmatpush1.msra.mxu0 0.0
        %385 = vmatprep.subr.mxu0 0.0
        %386 = vmatpush1.msra.mxu0 0.0
        %387 = vmatprep.subr.mxu0 0.0
        %388 = vmatpush1.msra.mxu0 0.0
        %389 = vmatprep.subr.mxu0 0.0
        %390 = vmatpush1.msra.mxu0 0.0
        %391 = vmatprep.subr.mxu0 0.0
        %392 = vmatpush1.msra.mxu0 0.0
        %393 = vmatprep.subr.mxu0 0.0
        %394 = vmatpush1.msra.mxu0 0.0
        %395 = vmatprep.subr.mxu0 0.0
        %396 = vmatpush1.msra.mxu0 0.0
        %397 = vmatprep.subr.mxu0 0.0
        %398 = vmatpush1.msra.mxu0 0.0
        %399 = vmatprep.mubr.f32.mxu0 0.0
        %400 = vmatmul.mubr.f32.gmra.mrb[0].mxu0 %v330
        %v401 = vpop.f32.mrb[0].mxu0
        %v402 = vadd.f32 %v326, %v401
        %v403 = vpop.f32.mrb[0].mxu0
        %404 = vmatprep.mubr.f32.mxu0 0.0
        %405 = vmatmul.mubr.f32.gmra.mrb[0].mxu0 %v333
        %v406 = vpop.f32.mrb[0].mxu0
        %v407 = vadd.f32 %v326, %v406
        %v408 = vpop.f32.mrb[0].mxu0
        %409 = vdwg.mxu0
        %v410 = vmax.f32 %v402, 0.0
        %v411 = vmax.f32 %v407, 0.0
        %v412 = vld [vmem:[%s4] sm:$0xff]
        %v413 = vld [vmem:[%s4 + $0x8] sm:$0xff]
        %v414 = vld [vmem:[%s4 + $0x10] sm:$0xff]
        %v415 = vld [vmem:[%s4 + $0x18] sm:$0xff]
        %v416 = vld [vmem:[%s5] sm:$0x1]
        %v418 = vlaneseq
        %v419 = vshrl.u32 %v418, 7
        %v420 = vsub.s32 0, %v419
        %v421 = vrot.slane %v416, %v420
        %vm423 = vcmask 261120
        %v425 = vsel %vm423, %v410, 0
        %v428 = vsel %vm423, %v411, 0
        %430 = vmatprep.subr.mxu0 0.0
        %431 = vmatpush1.msra.mxu0 %v412
        %432 = vmatprep.subr.mxu0 0.0
        %433 = vmatpush1.msra.mxu0 %v413
        %434 = vmatprep.subr.mxu0 0.0
        %435 = vmatpush1.msra.mxu0 %v414
        %436 = vmatprep.subr.mxu0 0.0
        %437 = vmatpush1.msra.mxu0 %v415
        %438 = vmatprep.subr.mxu0 0.0
        %439 = vmatpush1.msra.mxu0 0.0
        %440 = vmatprep.subr.mxu0 0.0
        %441 = vmatpush1.msra.mxu0 0.0
        %442 = vmatprep.subr.mxu0 0.0
        %443 = vmatpush1.msra.mxu0 0.0
        %444 = vmatprep.subr.mxu0 0.0
        %445 = vmatpush1.msra.mxu0 0.0
        %446 = vmatprep.subr.mxu0 0.0
        %447 = vmatpush1.msra.mxu0 0.0
        %448 = vmatprep.subr.mxu0 0.0
        %449 = vmatpush1.msra.mxu0 0.0
        %450 = vmatprep.subr.mxu0 0.0
        %451 = vmatpush1.msra.mxu0 0.0
        %452 = vmatprep.subr.mxu0 0.0
        %453 = vmatpush1.msra.mxu0 0.0
        %454 = vmatprep.subr.mxu0 0.0
        %455 = vmatpush1.msra.mxu0 0.0
        %456 = vmatprep.subr.mxu0 0.0
        %457 = vmatpush1.msra.mxu0 0.0
        %458 = vmatprep.subr.mxu0 0.0
        %459 = vmatpush1.msra.mxu0 0.0
        %460 = vmatprep.subr.mxu0 0.0
        %461 = vmatpush1.msra.mxu0 0.0
        %462 = vmatprep.subr.mxu0 0.0
        %463 = vmatpush1.msra.mxu0 0.0
        %464 = vmatprep.subr.mxu0 0.0
        %465 = vmatpush1.msra.mxu0 0.0
        %466 = vmatprep.subr.mxu0 0.0
        %467 = vmatpush1.msra.mxu0 0.0
        %468 = vmatprep.subr.mxu0 0.0
        %469 = vmatpush1.msra.mxu0 0.0
        %470 = vmatprep.subr.mxu0 0.0
        %471 = vmatpush1.msra.mxu0 0.0
        %472 = vmatprep.subr.mxu0 0.0
        %473 = vmatpush1.msra.mxu0 0.0
        %474 = vmatprep.subr.mxu0 0.0
        %475 = vmatpush1.msra.mxu0 0.0
        %476 = vmatprep.subr.mxu0 0.0
        %477 = vmatpush1.msra.mxu0 0.0
        %478 = vmatprep.subr.mxu0 0.0
        %479 = vmatpush1.msra.mxu0 0.0
        %480 = vmatprep.subr.mxu0 0.0
        %481 = vmatpush1.msra.mxu0 0.0
        %482 = vmatprep.subr.mxu0 0.0
        %483 = vmatpush1.msra.mxu0 0.0
        %484 = vmatprep.subr.mxu0 0.0
        %485 = vmatpush1.msra.mxu0 0.0
        %486 = vmatprep.subr.mxu0 0.0
        %487 = vmatpush1.msra.mxu0 0.0
        %488 = vmatprep.subr.mxu0 0.0
        %489 = vmatpush1.msra.mxu0 0.0
        %490 = vmatprep.subr.mxu0 0.0
        %491 = vmatpush1.msra.mxu0 0.0
        %492 = vmatprep.subr.mxu0 0.0
        %493 = vmatpush1.msra.mxu0 0.0
        %494 = vmatprep.mubr.f32.mxu0 0.0
        %495 = vmatmul.mubr.f32.gmra.mrb[0].mxu0 %v425
        %v496 = vpop.f32.mrb[0].mxu0
        %v497 = vadd.f32 %v421, %v496
        %v498 = vpop.f32.mrb[0].mxu0
        %499 = vmatprep.mubr.f32.mxu0 0.0
        %500 = vmatmul.mubr.f32.gmra.mrb[0].mxu0 %v428
        %v501 = vpop.f32.mrb[0].mxu0
        %v502 = vadd.f32 %v421, %v501
        %v503 = vpop.f32.mrb[0].mxu0
        %504 = vdwg.mxu0
        %v505 = vxor.u32 %v497, 2147483648
        %v506 = vxor.u32 %v502, 2147483648
        %v507 = vmul.f32 %v505, 1.442695
        %v508 = vpow.pop %v507
        %v509 = vmul.f32 %v506, 1.442695
        %v510 = vpow.pop %v509
        %v511 = vadd.f32 %v508, 1.0
        %v512 = vadd.f32 %v510, 1.0
        %v513 = vrcp.pop %v511
        %v514 = vmul.f32 1.0, %v513
        %v515 = vrcp.pop %v512
        %v516 = vmul.f32 1.0, %v515
        %517 = vxpose.xlu0.b32.start [1/16] %v514, 128
        %518 = vxpose.xlu0.b32.cont [2/16] %v516, 128
        %519 = vxpose.xlu0.b32.cont [3/16] 0.0, 128
        %520 = vxpose.xlu0.b32.cont [4/16] 0.0, 128
        %521 = vxpose.xlu0.b32.cont [5/16] 0.0, 128
        %522 = vxpose.xlu0.b32.cont [6/16] 0.0, 128
        %523 = vxpose.xlu0.b32.cont [7/16] 0.0, 128
        %524 = vxpose.xlu0.b32.cont [8/16] 0.0, 128
        %525 = vxpose.xlu0.b32.cont [9/16] 0.0, 128
        %526 = vxpose.xlu0.b32.cont [10/16] 0.0, 128
        %527 = vxpose.xlu0.b32.cont [11/16] 0.0, 128
        %528 = vxpose.xlu0.b32.cont [12/16] 0.0, 128
        %529 = vxpose.xlu0.b32.cont [13/16] 0.0, 128
        %530 = vxpose.xlu0.b32.cont [14/16] 0.0, 128
        %531 = vxpose.xlu0.b32.cont [15/16] 0.0, 128
        %532 = vxpose.xlu0.b32.end [16/16] 0.0, 128
        %v533 = vpop.trf.xlu0
        %v534 = vpop.trf.xlu0
        %v535 = vpop.trf.xlu0
        %v536 = vpop.trf.xlu0
        %v537 = vpop.trf.xlu0
        %v538 = vpop.trf.xlu0
        %v539 = vpop.trf.xlu0
        %v540 = vpop.trf.xlu0
        %v541 = vpop.trf.xlu0
        %v542 = vpop.trf.xlu0
        %v543 = vpop.trf.xlu0
        %v544 = vpop.trf.xlu0
        %v545 = vpop.trf.xlu0
        %v546 = vpop.trf.xlu0
        %v547 = vpop.trf.xlu0
        %v548 = vpop.trf.xlu0
        %v549 = vld [vmem:[%s310] sm:$0xff]
        %v550 = vld [vmem:[%s310 + $0x8] sm:$0xff]
        %v551 = vld [vmem:[%s310 + $0x10] sm:$0xff]
        %v552 = vld [vmem:[%s310 + $0x18] sm:$0xff]
        %v553 = vld [vmem:[%s310 + $0x20] sm:$0xff]
        %v554 = vld [vmem:[%s310 + $0x28] sm:$0xff]
        %v555 = vld [vmem:[%s310 + $0x30] sm:$0xff]
        %v556 = vld [vmem:[%s310 + $0x38] sm:$0xff]
        %v557 = vmul.f32 %v549, %v533
        %v558 = vmul.f32 %v550, %v534
        %v559 = vmul.f32 %v551, %v535
        %v560 = vmul.f32 %v552, %v536
        %v561 = vmul.f32 %v553, %v537
        %v562 = vmul.f32 %v554, %v538
        %v563 = vmul.f32 %v555, %v539
        %v564 = vmul.f32 %v556, %v540
        %vm565 = vcmask 130048
        %566 = vst.msk [vmem:[%s292] sm:$0xff] %vm565, %v557
        %567 = vst.msk [vmem:[%s292 + $0x8] sm:$0xff] %vm565, %v558
        %568 = vst.msk [vmem:[%s292 + $0x10] sm:$0xff] %vm565, %v559
        %569 = vst.msk [vmem:[%s292 + $0x18] sm:$0xff] %vm565, %v560
        %570 = vst.msk [vmem:[%s292 + $0x20] sm:$0xff] %vm565, %v561
        %571 = vst.msk [vmem:[%s292 + $0x28] sm:$0xff] %vm565, %v562
        %572 = vst.msk [vmem:[%s292 + $0x30] sm:$0xff] %vm565, %v563
        %573 = vst.msk [vmem:[%s292 + $0x38] sm:$0xff] %vm565, %v564
        %s574 = sand.u32 %s182, 1
        %s575 = scalar_lea.sflag [#allocation3], %s574
        %s576 = sand.u32 %s182, 1
        %s577 = smul.addr %s576, 64
        %s578 = scalar_lea.vmem [#allocation2], %s577
        // Predicated region
        $region45: #{waveletattspace_forward.1} parent=43 // pred_check
          %p579 = pneg %p192
        $region46: #{waveletattspace_forward.1} parent=43 // pred_check_branch
          %581 = sbr.rel (%p579) target = $region48
        $region47: #{waveletattspace_forward.1} parent=43 // pred_region
          %s583 = ssub.s32 1024, 1024
          %584 = vsyncadd %s575, %s583
          %s585 = smul.addr %s24, 8
          %s586 = sadd.s32 %s25, %s585
          %s587 = smul.addr %s586, 128
          %s588 = scalar_lea.hbm %s6, %s587
          %s589 = sshll.u32 %s578, 4
          %s590 = int_to_ptr.vmem [resolvable:$true] %s589
          %595 = dma.vmem_to_hbm [thread:$0]  %s590, 1024, %s588, %s575, 128, 128, 8
        $region48: #{waveletattspace_forward.1} parent=43 // pred_fallthru
          _
      $region44: #{waveletattspace_forward.1} parent=5 // pred_fallthru
        _
      %p596 = scmp.le.s32.totalorder 2, %s15
      // Predicated region
      $region49: #{waveletattspace_forward.1} parent=5 // pred_check
        %p597 = pneg %p596
      $region50: #{waveletattspace_forward.1} parent=5 // pred_check_branch
        %599 = sbr.rel (%p597) target = $region52
      $region51: #{waveletattspace_forward.1} parent=5 // pred_region
        %s600 = ssub.s32 %s15, 2
        // Predicated region
        $region53: #{waveletattspace_forward.1} parent=51 // pred_check
          %p601 = pneg %p198
        $region54: #{waveletattspace_forward.1} parent=51 // pred_check_branch
          %603 = sbr.rel (%p601) target = $region56
        $region55: #{waveletattspace_forward.1} parent=51 // pred_region
          %s604 = sand.u32 %s183, 1
          %s605 = scalar_lea.sflag [#allocation3], %s604
          %s606 = sand.u32 %s183, 1
          %s607 = smul.addr %s606, 64
          %s608 = scalar_lea.vmem [#allocation2], %s607
          %609 = dma.done %s605, 1024
        $region56: #{waveletattspace_forward.1} parent=51 // pred_fallthru
          _
      $region52: #{waveletattspace_forward.1} parent=5 // pred_fallthru
        _
    $region6: #{waveletattspace_forward.1} parent=1 // loop_footer
      %s19 = sadd.s32 1, %s15
    $region7: #{waveletattspace_forward.1} parent=1 // loop_footer_branch
      %14 = sbr.rel target = $region3
    $region8: #{waveletattspace_forward.1} parent=1 // loop_exit
      _
    %610 = vsyncpa [#allocation3], 1
    %s611 = scalar_lea.sflag [#allocation3], 1
    %612 = vsyncpa %s611, 1

</llo_original>
